<compile_context>
chip_gen: v7x
topology: tpu7x:2x2x1
jax: 0.10.0
libtpu: 0.0.40
codegen_flags: <defaults>
</compile_context>

<pallas_src>
import math

import jax
import jax.numpy as jnp
from jax.experimental import pallas as pl
from jax.experimental.pallas import tpu as pltpu


def _build_fixed_table(c_in: int, d_model: int) -> jnp.ndarray:
    """Deterministic sinusoidal table, identical to the PyTorch __init__."""
    assert d_model % 2 == 0, "FixedEmbedding requires an even d_model"
    position = jnp.arange(0, c_in, dtype=jnp.float32)[:, None]          # (c_in, 1)
    div_term = jnp.exp(
        jnp.arange(0, d_model, 2, dtype=jnp.float32)
        * (-(math.log(10000.0) / d_model))
    )                                                                    # (d_model/2,)
    w = jnp.zeros((c_in, d_model), dtype=jnp.float32)
    w = w.at[:, 0::2].set(jnp.sin(position * div_term))
    w = w.at[:, 1::2].set(jnp.cos(position * div_term))
    return w


def _round_up(x: int, m: int) -> int:
    return (x + m - 1) // m * m


def _cdiv(a: int, b: int) -> int:
    return -(-a // b)


def _embedding_kernel(idx_ref, wblk_ref, out_ref):
    """Fused lookup: out = one_hot(idx_off) @ W_blockdiag.

    idx_ref : (R, FOLD) int32   — indices already offset by f*c_in per fold column
    wblk_ref: (FOLD*c_in, FOLD*d_model) block-diagonal table, VMEM-resident
    out_ref : (R, FOLD*d_model) lane-dense output tile (>=128 lanes when folded)

    One (R, FOLD*c_in) one-hot, ONE MXU matmul, ONE unmasked full-width store —
    replaces the previous per-fold narrow matmuls and masked sub-vreg stores.
    """
    wblk = wblk_ref[...]                                  # (fold*c_in, fold*d_model)
    k = wblk.shape[0]
    idx = idx_ref[...]                                    # (R, fold) int32
    rows, fold = idx.shape

    # Hoisted iota (broadcasts are not CSE'd by JAX).
    col = jax.lax.broadcasted_iota(jnp.int32, (rows, k), dimension=1)

    # fold cheap VPU compares; hit columns are disjoint per fold group so a sum
    # yields the exact one-hot.
    onehot = (col == idx[:, 0:1]).astype(wblk.dtype)
    for f in range(1, fold):                              # static, tiny unroll
        onehot = onehot + (col == idx[:, f:f + 1]).astype(wblk.dtype)

    out_ref[...] = jnp.dot(
        onehot, wblk, preferred_element_type=jnp.float32
    ).astype(out_ref.dtype)


def fixed_embedding(x: jnp.ndarray, table: jnp.ndarray, *,
                    rows_per_step: int = 4096,
                    out_dtype=None,
                    use_pallas=None) -> jnp.ndarray:
    """Equivalent of FixedEmbedding.forward(x) for an integer index tensor x."""
    c_in, d_model = table.shape
    orig_shape = x.shape
    n = int(x.size)
    out_dtype = table.dtype if out_dtype is None else out_dtype

    # TODO(synk): PyTorch nn.Embedding errors on out-of-range indices; we clamp.
    idx = jnp.clip(x.reshape(-1).astype(jnp.int32), 0, c_in - 1)

    # Small lookups: pallas_call launch + step overhead loses to an XLA gather.
    if use_pallas is None:
        use_pallas = n >= (1 << 17)
    if not use_pallas:
        return jnp.take(table.astype(out_dtype), idx, axis=0).reshape(
            *orig_shape, d_model)

    # Fold tokens along lanes so each kernel output row is >= 128 lanes wide.
    if d_model < 128 and 128 % d_model == 0:
        fold = 128 // d_model
    else:
        fold = 1   # d_model >= 128 is already lane-dense; odd widths (e.g. 96)
                   # degrade to masked stores — correct but untuned.

    rows = _cdiv(n, fold)
    rows_pad = _round_up(rows, 8)              # sublane alignment only (<=7 rows)
    n_pad = rows_pad * fold

    r_step = _round_up(min(rows_per_step, rows_pad), 8)
    # Keep >= 2 grid steps when splittable so v7x's two TensorCores both work.
    if rows_pad > 8 and _cdiv(rows_pad, r_step) < 2:
        r_step = _round_up(_cdiv(rows_pad, 2), 8)
    grid = (_cdiv(rows_pad, r_step),)          # last block may be partial (masked DMA)

    # Bake the per-fold row offset (f*c_in) into the indices (cheap, in XLA).
    idx_p = jnp.pad(idx, (0, n_pad - n)).reshape(rows_pad, fold)
    idx_p = idx_p + jnp.arange(fold, dtype=jnp.int32)[None, :] * c_in

    # Block-diagonal table: one (R, fold*c_in) @ (fold*c_in, fold*d_model) matmul
    # serves all folds at once.  ~2 KB -> (64,128)=32 KB f32; VMEM-resident.
    w_blk = jnp.kron(jnp.eye(fold, dtype=table.dtype), table)

    out_folded = pl.pallas_call(
        _embedding_kernel,
        out_shape=jax.ShapeDtypeStruct((rows_pad, fold * d_model), out_dtype),
        grid=grid,
        in_specs=[
            # indices: compact (r_step, fold) block, tiled over the grid
            pl.BlockSpec((r_step, fold), lambda i: (i, 0)),
            # block-diagonal table: tiny, VMEM-resident for every grid step
            pl.BlockSpec((fold * c_in, fold * d_model), lambda i: (0, 0)),
        ],
        # lane-dense output tile (fold*d_model == 128 for d_model < 128)
        out_specs=pl.BlockSpec((r_step, fold * d_model), lambda i: (i, 0)),
        compiler_params=pltpu.CompilerParams(
            dimension_semantics=("parallel",),
        ),
    )(idx_p, w_blk)

    # Row-major un-fold is free layout plumbing; the slice only copies when n is
    # not already a multiple of 8*fold.
    out = out_folded.reshape(n_pad, d_model)
    if n_pad != n:
        out = out[:n]
    return out.reshape(*orig_shape, d_model)


if __name__ == "__main__":
    c_in, d_model = 16, 32          # module constructor args
    B, L = 2, 8                     # small index tensor (e.g. time-feature marks)

    table = _build_fixed_table(c_in, d_model)

    key = jax.random.PRNGKey(0)
    x = jax.random.randint(key, (B, L), minval=0, maxval=c_in, dtype=jnp.int32)

    # Force the Pallas path so the kernel itself is exercised at demo sizes.
    out = fixed_embedding(x, table, use_pallas=True)
    out = jax.block_until_ready(out)

    # reference check (plain JAX gather)
    ref = jnp.take(table, x, axis=0)
    assert out.shape == (B, L, d_model)
    assert out.dtype == jnp.float32
    assert bool(jnp.allclose(out, ref, atol=1e-5)), "mismatch vs reference gather"

    print("KERNEL_OK")
</pallas_src>

<mosaic_0001>
module attributes {stable_mosaic.version = 11 : i64} {
  func.func @_embedding_kernel(%arg0: i32, %arg1: memref<8x4xi32, #tpu.memory_space<vmem>>, %arg2: memref<64x128xf32, #tpu.memory_space<vmem>>, %arg3: memref<8x128xf32, #tpu.memory_space<vmem>>) attributes {dimension_semantics = [#tpu.dimension_semantics<parallel>], iteration_bounds = array<i64: 1>, scalar_prefetch = 0 : i64, scratch_operands = 0 : i64, tpu.core_type = #tpu.core_type<tc>, window_params = [{transform_indices = @transform_0, window_bounds = array<i64: 8, 4>}, {pipeline_mode = #tpu.pipeline_mode<synchronous>, transform_indices = @transform_1, window_bounds = array<i64: 64, 128>}, {transform_indices = @transform_2, window_bounds = array<i64: 8, 128>}]} {
    %c0 = arith.constant 0 : index
    %c0_0 = arith.constant 0 : index
    %0 = vector.load %arg2[%c0, %c0_0] : memref<64x128xf32, #tpu.memory_space<vmem>>, vector<64x128xf32>
    %c0_1 = arith.constant 0 : index
    %c0_2 = arith.constant 0 : index
    %1 = vector.load %arg1[%c0_1, %c0_2] : memref<8x4xi32, #tpu.memory_space<vmem>>, vector<8x4xi32>
    %2 = tpu.iota {dimensions = array<i32: 1>} : vector<8x64xi32>
    %3 = vector.extract_strided_slice %1 {offsets = [0, 0], sizes = [8, 1], strides = [1, 1]} : vector<8x4xi32> to vector<8x1xi32>
    %4 = vector.broadcast %3 : vector<8x1xi32> to vector<8x64xi32>
    %5 = arith.cmpi eq, %2, %4 : vector<8x64xi32>
    %6 = arith.extui %5 : vector<8x64xi1> to vector<8x64xi32>
    %7 = arith.sitofp %6 : vector<8x64xi32> to vector<8x64xf32>
    %8 = vector.extract_strided_slice %1 {offsets = [0, 1], sizes = [8, 1], strides = [1, 1]} : vector<8x4xi32> to vector<8x1xi32>
    %9 = vector.broadcast %8 : vector<8x1xi32> to vector<8x64xi32>
    %10 = arith.cmpi eq, %2, %9 : vector<8x64xi32>
    %11 = arith.extui %10 : vector<8x64xi1> to vector<8x64xi32>
    %12 = arith.sitofp %11 : vector<8x64xi32> to vector<8x64xf32>
    %13 = arith.addf %7, %12 : vector<8x64xf32>
    %14 = vector.extract_strided_slice %1 {offsets = [0, 2], sizes = [8, 1], strides = [1, 1]} : vector<8x4xi32> to vector<8x1xi32>
    %15 = vector.broadcast %14 : vector<8x1xi32> to vector<8x64xi32>
    %16 = arith.cmpi eq, %2, %15 : vector<8x64xi32>
    %17 = arith.extui %16 : vector<8x64xi1> to vector<8x64xi32>
    %18 = arith.sitofp %17 : vector<8x64xi32> to vector<8x64xf32>
    %19 = arith.addf %13, %18 : vector<8x64xf32>
    %20 = vector.extract_strided_slice %1 {offsets = [0, 3], sizes = [8, 1], strides = [1, 1]} : vector<8x4xi32> to vector<8x1xi32>
    %21 = vector.broadcast %20 : vector<8x1xi32> to vector<8x64xi32>
    %22 = arith.cmpi eq, %2, %21 : vector<8x64xi32>
    %23 = arith.extui %22 : vector<8x64xi1> to vector<8x64xi32>
    %24 = arith.sitofp %23 : vector<8x64xi32> to vector<8x64xf32>
    %25 = arith.addf %19, %24 : vector<8x64xf32>
    %cst = arith.constant dense<0.000000e+00> : vector<8x128xf32>
    %26 = tpu.matmul %25, %0, %cst {dimension_numbers = #tpu.dot_dimension_numbers<[1], [0], [0], [1], [0, 0, 1, 1], [], []>} : vector<8x64xf32>, vector<64x128xf32>, vector<8x128xf32> -> vector<8x128xf32>
    %c0_3 = arith.constant 0 : index
    %c0_4 = arith.constant 0 : index
    %27 = vector.load %arg3[%c0_3, %c0_4] : memref<8x128xf32, #tpu.memory_space<vmem>>, vector<8x128xf32>
    tpu.vector_store %arg3[%c0_3, %c0_4], %26 {strides = array<i32>} : memref<8x128xf32, #tpu.memory_space<vmem>>, vector<8x128xf32>,
    return
  }
  func.func @transform_0(%arg0: i32) -> (i32, i32) {
    %c0_i32 = arith.constant 0 : i32
    %c0_i32_0 = arith.constant 0 : i32
    return %arg0, %c0_i32 : i32, i32
  }
  func.func @transform_1(%arg0: i32) -> (i32, i32) {
    %c0_i32 = arith.constant 0 : i32
    %c0_i32_0 = arith.constant 0 : i32
    %c0_i32_1 = arith.constant 0 : i32
    return %c0_i32, %c0_i32_0 : i32, i32
  }
  func.func @transform_2(%arg0: i32) -> (i32, i32) {
    %c0_i32 = arith.constant 0 : i32
    %c0_i32_0 = arith.constant 0 : i32
    return %arg0, %c0_i32 : i32, i32
  }
}

</mosaic_0001>

<llo_original>
// kernel: tpu_custom_call.1
$region0: #{tpu_custom_call.1}
  #allocation0 [shape = 'u32[]', space=smem, size = 0x4, offset = 0x4, fixed_abs, tag = 'smem constant byte address 0x4 - core index']
  #allocation1 [shape = 'u32[144,128]{1,0:T(1,128)}', space=vmem, size = 0x12000, scoped, tag = 'internal scratch']
  %s0 = inlined_call_operand.vmem [shape: s32[8,4], index: 0, kind: input, shape index: {}]
  %s1 = inlined_call_operand.hbm [shape: f32[64,128], index: 1, kind: input, shape index: {}]
  %s2 = inlined_call_operand.hbm [shape: f32[8,128], index: 2, kind: output, shape index: {}]
  %s3 = sld [smem:[#allocation0]]
  $region22: #{tpu_custom_call.1} parent=0
    _
  %s5 = ssub.s32 1, %s3
  %s6 = scalar_select 0, %s5, %s3
  $region1: #{tpu_custom_call.1} parent=0
    #allocation2 [shape = 'u8[32768]{0}', space=vmem, size = 0x8000, scoped, tag = 'input window, operand 1, single buffered']
    #allocation3 [shape = 's32[1]{0}', space=sflag, size = 0x4, scoped, tag = 'scoped memory for tpu_custom_call.1']
    #allocation4 [shape = 's32[1]{0}', space=sflag, size = 0x4, scoped, tag = 'scoped memory for tpu_custom_call.1']
    #allocation5 [shape = 'u8[4096]{0}', space=vmem, size = 0x1000, scoped, tag = 'output window, operand 0, single buffered']
    %7 = vsyncpa [#allocation3], 0
    %8 = vsyncpa [#allocation4], 0
    // Predicated region
    $region2: #{tpu_custom_call.1} parent=1 // pred_check
      _
    $region3: #{tpu_custom_call.1} parent=1 // pred_check_branch
      %10 = sbr.rel (0) target = $region5
    $region4: #{tpu_custom_call.1} parent=1 // pred_region
      _
    $region5: #{tpu_custom_call.1} parent=1 // pred_fallthru
      _
    // Predicated region
    $region6: #{tpu_custom_call.1} parent=1 // pred_check
      _
    $region7: #{tpu_custom_call.1} parent=1 // pred_check_branch
      %12 = sbr.rel (0) target = $region9
    $region8: #{tpu_custom_call.1} parent=1 // pred_region
      %s14 = ssub.s32 1024, 1024
      %15 = vsyncadd [#allocation3], %s14
      %s16 = sshll.u32 [#allocation2], 4
      %s17 = int_to_ptr.vmem [resolvable:$true] %s16
      %22 = dma.hbm_to_vmem [thread:$0]  %s1, 1024, %s17, [#allocation3], 128, 128, 8
    $region9: #{tpu_custom_call.1} parent=1 // pred_fallthru
      _
    // Predicated region
    $region10: #{tpu_custom_call.1} parent=1 // pred_check
      _
    $region11: #{tpu_custom_call.1} parent=1 // pred_check_branch
      %24 = sbr.rel (0) target = $region13
    $region12: #{tpu_custom_call.1} parent=1 // pred_region
      %25 = dma.done [#allocation3], 1024
    $region13: #{tpu_custom_call.1} parent=1 // pred_fallthru
      _
    %v26 = vld [vmem:[#allocation2] sm:$0xff]
    %v27 = vld [vmem:[#allocation2 + $0x8] sm:$0xff]
    %v28 = vld [vmem:[#allocation2 + $0x10] sm:$0xff]
    %v29 = vld [vmem:[#allocation2 + $0x18] sm:$0xff]
    %v30 = vld [vmem:[#allocation2 + $0x20] sm:$0xff]
    %v31 = vld [vmem:[#allocation2 + $0x28] sm:$0xff]
    %v32 = vld [vmem:[#allocation2 + $0x30] sm:$0xff]
    %v33 = vld [vmem:[#allocation2 + $0x38] sm:$0xff]
    %v34 = vld [vmem:[%s0] sm:$0xff]
    %v35 = vlaneseq
    %v36 = vand.u32 %v35, 127
    %37 = vset.pattern.permute.xlu0 0
    %38 = vperm.xlu0 %37, %v34
    %v39 = vpop.permute.xlu0 %38
    %vm40 = vcmp.eq.s32.totalorder %v36, %v39
    %v41 = vsel %vm40, 1, 0
    %v42 = vcvt.s32.f32 %v41
    %43 = vset.pattern.permute.xlu0 1
    %44 = vperm.xlu0 %43, %v34
    %v45 = vpop.permute.xlu0 %44
    %vm46 = vcmp.eq.s32.totalorder %v36, %v45
    %v47 = vsel %vm46, 1, 0
    %v48 = vcvt.s32.f32 %v47
    %v49 = vadd.f32 %v42, %v48
    %50 = vset.pattern.permute.xlu0 2
    %51 = vperm.xlu0 %50, %v34
    %v52 = vpop.permute.xlu0 %51
    %vm53 = vcmp.eq.s32.totalorder %v36, %v52
    %v54 = vsel %vm53, 1, 0
    %v55 = vcvt.s32.f32 %v54
    %v56 = vadd.f32 %v49, %v55
    %57 = vset.pattern.permute.xlu0 3
    %58 = vperm.xlu0 %57, %v34
    %v59 = vpop.permute.xlu0 %58
    %vm60 = vcmp.eq.s32.totalorder %v36, %v59
    %v61 = vsel %vm60, 1, 0
    %v62 = vcvt.s32.f32 %v61
    %v63 = vadd.f32 %v56, %v62
    %vm64 = vcmask 523264
    %v66 = vsel %vm64, %v63, 0
    %68 = vmatprep.subr.mxu0 0.0
    %69 = vmatpush1.msra.mxu0 %v26
    %70 = vmatprep.subr.mxu0 0.0
    %71 = vmatpush1.msra.mxu0 %v27
    %72 = vmatprep.subr.mxu0 0.0
    %73 = vmatpush1.msra.mxu0 %v28
    %74 = vmatprep.subr.mxu0 0.0
    %75 = vmatpush1.msra.mxu0 %v29
    %76 = vmatprep.subr.mxu0 0.0
    %77 = vmatpush1.msra.mxu0 %v30
    %78 = vmatprep.subr.mxu0 0.0
    %79 = vmatpush1.msra.mxu0 %v31
    %80 = vmatprep.subr.mxu0 0.0
    %81 = vmatpush1.msra.mxu0 %v32
    %82 = vmatprep.subr.mxu0 0.0
    %83 = vmatpush1.msra.mxu0 %v33
    %84 = vmatprep.subr.mxu0 0.0
    %85 = vmatpush1.msra.mxu0 0.0
    %86 = vmatprep.subr.mxu0 0.0
    %87 = vmatpush1.msra.mxu0 0.0
    %88 = vmatprep.subr.mxu0 0.0
    %89 = vmatpush1.msra.mxu0 0.0
    %90 = vmatprep.subr.mxu0 0.0
    %91 = vmatpush1.msra.mxu0 0.0
    %92 = vmatprep.subr.mxu0 0.0
    %93 = vmatpush1.msra.mxu0 0.0
    %94 = vmatprep.subr.mxu0 0.0
    %95 = vmatpush1.msra.mxu0 0.0
    %96 = vmatprep.subr.mxu0 0.0
    %97 = vmatpush1.msra.mxu0 0.0
    %98 = vmatprep.subr.mxu0 0.0
    %99 = vmatpush1.msra.mxu0 0.0
    %100 = vmatprep.subr.mxu0 0.0
    %101 = vmatpush1.msra.mxu0 0.0
    %102 = vmatprep.subr.mxu0 0.0
    %103 = vmatpush1.msra.mxu0 0.0
    %104 = vmatprep.subr.mxu0 0.0
    %105 = vmatpush1.msra.mxu0 0.0
    %106 = vmatprep.subr.mxu0 0.0
    %107 = vmatpush1.msra.mxu0 0.0
    %108 = vmatprep.subr.mxu0 0.0
    %109 = vmatpush1.msra.mxu0 0.0
    %110 = vmatprep.subr.mxu0 0.0
    %111 = vmatpush1.msra.mxu0 0.0
    %112 = vmatprep.subr.mxu0 0.0
    %113 = vmatpush1.msra.mxu0 0.0
    %114 = vmatprep.subr.mxu0 0.0
    %115 = vmatpush1.msra.mxu0 0.0
    %116 = vmatprep.subr.mxu0 0.0
    %117 = vmatpush1.msra.mxu0 0.0
    %118 = vmatprep.subr.mxu0 0.0
    %119 = vmatpush1.msra.mxu0 0.0
    %120 = vmatprep.subr.mxu0 0.0
    %121 = vmatpush1.msra.mxu0 0.0
    %122 = vmatprep.subr.mxu0 0.0
    %123 = vmatpush1.msra.mxu0 0.0
    %124 = vmatprep.subr.mxu0 0.0
    %125 = vmatpush1.msra.mxu0 0.0
    %126 = vmatprep.subr.mxu0 0.0
    %127 = vmatpush1.msra.mxu0 0.0
    %128 = vmatprep.subr.mxu0 0.0
    %129 = vmatpush1.msra.mxu0 0.0
    %130 = vmatprep.subr.mxu0 0.0
    %131 = vmatpush1.msra.mxu0 0.0
    %132 = vmatprep.mubr.f32.mxu0 0.0
    %133 = vmatmul.mubr.f32.gmra.mrb[0].mxu0 %v66
    %v134 = vpop.f32.mrb[0].mxu0
    %v135 = vadd.f32 0.0, %v134
    %v136 = vpop.f32.mrb[0].mxu0
    %137 = vdwg.mxu0
    %138 = vst [vmem:[#allocation5] sm:$0xff] %v135
    // Predicated region
    $region14: #{tpu_custom_call.1} parent=1 // pred_check
      _
    $region15: #{tpu_custom_call.1} parent=1 // pred_check_branch
      %140 = sbr.rel (0) target = $region17
    $region16: #{tpu_custom_call.1} parent=1 // pred_region
      %s142 = ssub.s32 128, 128
      %143 = vsyncadd [#allocation4], %s142
      %s145 = sshll.u32 [#allocation5], 4
      %s146 = int_to_ptr.vmem [resolvable:$true] %s145
      %148 = dma.vmem_to_hbm [thread:$0]  %s146, 128, %s2, [#allocation4]
    $region17: #{tpu_custom_call.1} parent=1 // pred_fallthru
      _
    // Predicated region
    $region18: #{tpu_custom_call.1} parent=1 // pred_check
      _
    $region19: #{tpu_custom_call.1} parent=1 // pred_check_branch
      %150 = sbr.rel (0) target = $region21
    $region20: #{tpu_custom_call.1} parent=1 // pred_region
      %151 = dma.done [#allocation4], 128
    $region21: #{tpu_custom_call.1} parent=1 // pred_fallthru
      _
    %152 = vsyncpa [#allocation3], 1
    %153 = vsyncpa [#allocation4], 1

</llo_original>
